<compile_context>
chip_gen: v5e
topology: v5e:2x2
jax: 0.10.0
libtpu: 0.0.40
codegen_flags: <defaults>
</compile_context>

<pallas_src>
import functools

import jax
import jax.numpy as jnp
from jax.experimental import pallas as pl
from jax.experimental.pallas import tpu as pltpu

ALPHA = 0.1
K_HOPS = 10


def appnp_packed_kernel(x_ref, m_ref, w1_ref, b1_ref, w2_ref, b2_ref,
                        wlin_ref, blin_ref, wc_ref, bc_ref, out_ref):
    """One grid step = Bt graphs packed block-diagonally."""
    x = x_ref[0]          # [Bt*N, in_c]
    m = m_ref[0]          # [Bt*N, Bt*N]  block-diagonal APPNP operator

    # line1 + relu (dropout = identity in eval mode)
    h0 = jnp.maximum(
        jnp.dot(x, w1_ref[...], preferred_element_type=jnp.float32)
        + b1_ref[...], 0.0)
    z1 = jnp.dot(m, h0, preferred_element_type=jnp.float32)       # APPNP #1

    # line2 + relu + APPNP #2 (layer == 2 path)
    h1 = jnp.maximum(
        jnp.dot(z1, w2_ref[...], preferred_element_type=jnp.float32)
        + b2_ref[...], 0.0)
    z2 = jnp.dot(m, h1, preferred_element_type=jnp.float32)       # APPNP #2

    # lin: [Bt*N, F] -> [Bt*N, 1], relu
    s = jnp.maximum(
        jnp.dot(z2, wlin_ref[...], preferred_element_type=jnp.float32)
        + blin_ref[...], 0.0)

    # Conv1d(N, C, kernel_size=1) per packed graph == node-axis reduce against
    # the block-diagonally tiled conv weight.
    out_ref[0] = (jnp.sum(s * wc_ref[...], axis=0, keepdims=True)
                  + bc_ref[...])                                   # [1, Bt*C]


def build_propagation_matrix(graph):
    """adj = mean(graph, dim=1).real; binary edges; self-loops; gcn_norm."""
    adj = jnp.mean(graph, axis=1).real                      # [B, N, N]
    _, N, _ = adj.shape
    a_bin = (jnp.abs(adj) > 0).astype(jnp.float32)
    a_hat = jnp.maximum(a_bin, jnp.eye(N, dtype=jnp.float32)[None])
    deg = jnp.sum(a_hat, axis=-2)                           # column sums, [B, N]
    dinv = jnp.where(deg > 0, 1.0 / jnp.sqrt(deg), 0.0)
    a_hat_t = jnp.swapaxes(a_hat, -1, -2)
    # P[i, j] = d_i^-1/2 * A_hat[j, i] * d_j^-1/2
    return dinv[:, :, None] * a_hat_t * dinv[:, None, :]


def build_appnp_operator(P, alpha=ALPHA, k=K_HOPS):
    """M = ((1-a)P)^K + a*sum_{i<K}((1-a)P)^i, via Horner, batched over B."""
    B, N, _ = P.shape
    eye = jnp.broadcast_to(jnp.eye(N, dtype=P.dtype), (B, N, N))
    q = (1.0 - alpha) * P
    m = eye
    for _ in range(k):   # K batched [N,N]@[N,N] matmuls, done once per call
        m = jnp.einsum('bij,bjk->bik', q, m) + alpha * eye
    return m


def _pick_graphs_per_step(batch, n_nodes, target_rows=256):
    """Pack graphs to ~target_rows MXU rows; keep >=2 grid steps when possible."""
    bt = max(1, min(batch, target_rows // n_nodes))
    while bt > 1 and -(-batch // bt) < 2:
        bt = max(1, bt // 2)
    return bt


@functools.partial(jax.jit, static_argnames=("graphs_per_step",))
def appnp_net_forward(real, imag, graph, params, graphs_per_step=None):
    del imag  # unused by the reference forward
    B, N, in_c = real.shape
    w1, b1, w2, b2, wlin, blin, wc, bc = params
    F = w1.shape[1]
    C = wc.shape[1]

    # Dense gcn_norm adjacency -> collapsed APPNP operator (K matmuls, once).
    P = build_propagation_matrix(graph)                  # [B, N, N] f32
    M = build_appnp_operator(P)                          # [B, N, N] f32

    Bt = graphs_per_step or _pick_graphs_per_step(B, N)  # graphs per grid step
    G = -(-B // Bt)                                      # grid steps
    Bp = G * Bt
    x = real.astype(jnp.float32)
    if Bp != B:                                          # pad batch; sliced off below
        pad = ((0, Bp - B), (0, 0), (0, 0))
        x = jnp.pad(x, pad)
        M = jnp.pad(M, pad)

    # Block-diagonal packing of Bt graphs per grid step.
    eye_bt = jnp.eye(Bt, dtype=jnp.float32)
    m_bd = jnp.einsum('gbij,bc->gbicj', M.reshape(G, Bt, N, N),
                      eye_bt).reshape(G, Bt * N, Bt * N)
    x_pk = x.reshape(G, Bt * N, in_c)
    wc_bd = jnp.einsum('nc,bd->bndc', wc, eye_bt).reshape(Bt * N, Bt * C)
    bc_bd = jnp.tile(bc, (1, Bt))                        # [1, Bt*C]

    full = lambda shp: pl.BlockSpec(shp, lambda g: (0,) * len(shp))

    out = pl.pallas_call(
        appnp_packed_kernel,
        out_shape=jax.ShapeDtypeStruct((G, 1, Bt * C), jnp.float32),
        grid=(G,),
        in_specs=[
            pl.BlockSpec((1, Bt * N, in_c), lambda g: (g, 0, 0)),    # X packed
            pl.BlockSpec((1, Bt * N, Bt * N), lambda g: (g, 0, 0)),  # M block-diag
            full((in_c, F)),                                         # W1
            full((1, F)),                                            # b1
            full((F, F)),                                            # W2
            full((1, F)),                                            # b2
            full((F, 1)),                                            # Wlin
            full((1, 1)),                                            # blin
            full((Bt * N, Bt * C)),                                  # Wconv block-diag
            full((1, Bt * C)),                                       # bconv tiled
        ],
        out_specs=pl.BlockSpec((1, 1, Bt * C), lambda g: (g, 0, 0)),
        compiler_params=pltpu.CompilerParams(
            dimension_semantics=("parallel",)),
    )(x_pk, m_bd, w1, b1, w2, b2, wlin, blin, wc_bd, bc_bd)

    return out.reshape(Bp, C)[:B]                        # [B, num_classes]


def reference_forward(real, graph, params):
    """Pure-JAX reference matching the PyTorch semantics (eval mode)."""
    w1, b1, w2, b2, wlin, blin, wc, bc = params
    P = build_propagation_matrix(graph)
    relu = lambda v: jnp.maximum(v, 0.0)

    def prop(h):
        z = h
        for _ in range(K_HOPS):
            z = (1.0 - ALPHA) * jnp.einsum('bij,bjf->bif', P, z) + ALPHA * h
        return z

    h0 = relu(jnp.einsum('bni,if->bnf', real, w1) + b1)
    z1 = prop(h0)
    h1 = relu(jnp.einsum('bnf,fg->bng', z1, w2) + b2)
    z2 = prop(h1)
    s = relu(jnp.einsum('bnf,fo->bno', z2, wlin) + blin)[..., 0]   # [B, N]
    return jnp.einsum('bn,nc->bc', s, wc) + bc                     # [B, C]


def init_params(key, in_c, num_filter, num_nodes, num_classes):
    ks = jax.random.split(key, 8)
    scl = lambda k, shp, fan_in: (
        jax.random.normal(k, shp, jnp.float32) / jnp.sqrt(float(fan_in)))
    w1 = scl(ks[0], (in_c, num_filter), in_c)
    b1 = scl(ks[1], (1, num_filter), in_c)
    w2 = scl(ks[2], (num_filter, num_filter), num_filter)
    b2 = scl(ks[3], (1, num_filter), num_filter)
    wlin = scl(ks[4], (num_filter, 1), num_filter)
    blin = scl(ks[5], (1, 1), num_filter)
    wc = scl(ks[6], (num_nodes, num_classes), num_nodes)   # Conv1d(N, C, k=1) weight
    bc = scl(ks[7], (1, num_classes), num_nodes)
    return (w1, b1, w2, b2, wlin, blin, wc, bc)


if __name__ == "__main__":
    B, Q, N = 8, 2, 30          # N = 30 nodes (fixed by Conv1d(30, ...) in the module)
    in_c, num_filter, num_classes = 4, 32, 3

    key = jax.random.PRNGKey(0)
    k_x, k_imag, k_adj, k_p = jax.random.split(key, 4)

    real = jax.random.normal(k_x, (B, N, in_c), jnp.float32)
    imag = jax.random.normal(k_imag, (B, N, in_c), jnp.float32)

    # Random symmetric binary adjacency per graph, replicated over the Q axis,
    # with an arbitrary imaginary part (discarded by .real in the forward).
    r = jax.random.uniform(k_adj, (B, N, N))
    a = (r < 0.2).astype(jnp.float32)
    a = jnp.maximum(a, jnp.swapaxes(a, -1, -2))
    graph = (a[:, None, :, :] + 1j * 0.05 * a[:, None, :, :]).astype(jnp.complex64)
    graph = jnp.broadcast_to(graph, (B, Q, N, N))

    params = init_params(k_p, in_c, num_filter, N, num_classes)

    out = appnp_net_forward(real, imag, graph, params)
    out = jax.block_until_ready(out)

    ref = reference_forward(real, graph, params)
    assert out.shape == (B, num_classes), out.shape
    assert jnp.allclose(out, ref, rtol=1e-3, atol=1e-3), (out, ref)

    print("KERNEL_OK")
</pallas_src>

<mosaic_0001>
module attributes {stable_mosaic.version = 11 : i64} {
  func.func @appnp_packed_kernel(%arg0: i32, %arg1: memref<1x120x4xf32, #tpu.memory_space<vmem>>, %arg2: memref<1x120x120xf32, #tpu.memory_space<vmem>>, %arg3: memref<4x32xf32, #tpu.memory_space<vmem>>, %arg4: memref<1x32xf32, #tpu.memory_space<vmem>>, %arg5: memref<32x32xf32, #tpu.memory_space<vmem>>, %arg6: memref<1x32xf32, #tpu.memory_space<vmem>>, %arg7: memref<32x1xf32, #tpu.memory_space<vmem>>, %arg8: memref<1x1xf32, #tpu.memory_space<vmem>>, %arg9: memref<120x12xf32, #tpu.memory_space<vmem>>, %arg10: memref<1x12xf32, #tpu.memory_space<vmem>>, %arg11: memref<1x1x12xf32, #tpu.memory_space<vmem>>) attributes {dimension_semantics = [#tpu.dimension_semantics<parallel>], iteration_bounds = array<i64: 2>, scalar_prefetch = 0 : i64, scratch_operands = 0 : i64, tpu.core_type = #tpu.core_type<tc>, window_params = [{transform_indices = @transform_0, window_bounds = array<i64: 1, 120, 4>}, {transform_indices = @transform_1, window_bounds = array<i64: 1, 120, 120>}, {pipeline_mode = #tpu.pipeline_mode<synchronous>, transform_indices = @transform_2, window_bounds = array<i64: 4, 32>}, {pipeline_mode = #tpu.pipeline_mode<synchronous>, transform_indices = @transform_3, window_bounds = array<i64: 1, 32>}, {pipeline_mode = #tpu.pipeline_mode<synchronous>, transform_indices = @transform_4, window_bounds = array<i64: 32, 32>}, {pipeline_mode = #tpu.pipeline_mode<synchronous>, transform_indices = @transform_5, window_bounds = array<i64: 1, 32>}, {pipeline_mode = #tpu.pipeline_mode<synchronous>, transform_indices = @transform_6, window_bounds = array<i64: 32, 1>}, {pipeline_mode = #tpu.pipeline_mode<synchronous>, transform_indices = @transform_7, window_bounds = array<i64: 1, 1>}, {pipeline_mode = #tpu.pipeline_mode<synchronous>, transform_indices = @transform_8, window_bounds = array<i64: 120, 12>}, {pipeline_mode = #tpu.pipeline_mode<synchronous>, transform_indices = @transform_9, window_bounds = array<i64: 1, 12>}, {transform_indices = @transform_10, window_bounds = array<i64: 1, 1, 12>}]} {
    %c0 = arith.constant 0 : index
    %c0_0 = arith.constant 0 : index
    %c0_1 = arith.constant 0 : index
    %0 = vector.load %arg1[%c0, %c0_0, %c0_1] : memref<1x120x4xf32, #tpu.memory_space<vmem>>, vector<1x120x4xf32>
    %1 = vector.shape_cast %0 : vector<1x120x4xf32> to vector<120x4xf32>
    %c0_2 = arith.constant 0 : index
    %c0_3 = arith.constant 0 : index
    %c0_4 = arith.constant 0 : index
    %2 = vector.load %arg2[%c0_2, %c0_3, %c0_4] : memref<1x120x120xf32, #tpu.memory_space<vmem>>, vector<1x120x120xf32>
    %3 = vector.shape_cast %2 : vector<1x120x120xf32> to vector<120x120xf32>
    %c0_5 = arith.constant 0 : index
    %c0_6 = arith.constant 0 : index
    %4 = vector.load %arg3[%c0_5, %c0_6] : memref<4x32xf32, #tpu.memory_space<vmem>>, vector<4x32xf32>
    %cst = arith.constant dense<0.000000e+00> : vector<120x32xf32>
    %5 = tpu.matmul %1, %4, %cst {dimension_numbers = #tpu.dot_dimension_numbers<[1], [0], [0], [1], [0, 0, 1, 1], [], []>} : vector<120x4xf32>, vector<4x32xf32>, vector<120x32xf32> -> vector<120x32xf32>
    %c0_7 = arith.constant 0 : index
    %c0_8 = arith.constant 0 : index
    %6 = vector.load %arg4[%c0_7, %c0_8] : memref<1x32xf32, #tpu.memory_space<vmem>>, vector<1x32xf32>
    %7 = vector.broadcast %6 : vector<1x32xf32> to vector<120x32xf32>
    %8 = arith.addf %5, %7 : vector<120x32xf32>
    %cst_9 = arith.constant 0.000000e+00 : f32
    %9 = vector.broadcast %cst_9 : f32 to vector<120x32xf32>
    %10 = arith.maximumf %8, %9 : vector<120x32xf32>
    %cst_10 = arith.constant dense<0.000000e+00> : vector<120x32xf32>
    %11 = tpu.matmul %3, %10, %cst_10 {dimension_numbers = #tpu.dot_dimension_numbers<[1], [0], [0], [1], [0, 0, 1, 1], [], []>} : vector<120x120xf32>, vector<120x32xf32>, vector<120x32xf32> -> vector<120x32xf32>
    %c0_11 = arith.constant 0 : index
    %c0_12 = arith.constant 0 : index
    %12 = vector.load %arg5[%c0_11, %c0_12] : memref<32x32xf32, #tpu.memory_space<vmem>>, vector<32x32xf32>
    %cst_13 = arith.constant dense<0.000000e+00> : vector<120x32xf32>
    %13 = tpu.matmul %11, %12, %cst_13 {dimension_numbers = #tpu.dot_dimension_numbers<[1], [0], [0], [1], [0, 0, 1, 1], [], []>} : vector<120x32xf32>, vector<32x32xf32>, vector<120x32xf32> -> vector<120x32xf32>
    %c0_14 = arith.constant 0 : index
    %c0_15 = arith.constant 0 : index
    %14 = vector.load %arg6[%c0_14, %c0_15] : memref<1x32xf32, #tpu.memory_space<vmem>>, vector<1x32xf32>
    %15 = vector.broadcast %14 : vector<1x32xf32> to vector<120x32xf32>
    %16 = arith.addf %13, %15 : vector<120x32xf32>
    %cst_16 = arith.constant 0.000000e+00 : f32
    %17 = vector.broadcast %cst_16 : f32 to vector<120x32xf32>
    %18 = arith.maximumf %16, %17 : vector<120x32xf32>
    %cst_17 = arith.constant dense<0.000000e+00> : vector<120x32xf32>
    %19 = tpu.matmul %3, %18, %cst_17 {dimension_numbers = #tpu.dot_dimension_numbers<[1], [0], [0], [1], [0, 0, 1, 1], [], []>} : vector<120x120xf32>, vector<120x32xf32>, vector<120x32xf32> -> vector<120x32xf32>
    %c0_18 = arith.constant 0 : index
    %c0_19 = arith.constant 0 : index
    %20 = vector.load %arg7[%c0_18, %c0_19] : memref<32x1xf32, #tpu.memory_space<vmem>>, vector<32x1xf32>
    %cst_20 = arith.constant dense<0.000000e+00> : vector<120x1xf32>
    %21 = tpu.matmul %19, %20, %cst_20 {dimension_numbers = #tpu.dot_dimension_numbers<[1], [0], [0], [1], [0, 0, 1, 1], [], []>} : vector<120x32xf32>, vector<32x1xf32>, vector<120x1xf32> -> vector<120x1xf32>
    %c0_21 = arith.constant 0 : index
    %c0_22 = arith.constant 0 : index
    %22 = vector.load %arg8[%c0_21, %c0_22] : memref<1x1xf32, #tpu.memory_space<vmem>>, vector<1x1xf32>
    %23 = vector.broadcast %22 : vector<1x1xf32> to vector<120x1xf32>
    %24 = arith.addf %21, %23 : vector<120x1xf32>
    %cst_23 = arith.constant 0.000000e+00 : f32
    %25 = vector.broadcast %cst_23 : f32 to vector<120x1xf32>
    %26 = arith.maximumf %24, %25 : vector<120x1xf32>
    %c0_24 = arith.constant 0 : index
    %c0_25 = arith.constant 0 : index
    %27 = vector.load %arg9[%c0_24, %c0_25] : memref<120x12xf32, #tpu.memory_space<vmem>>, vector<120x12xf32>
    %28 = vector.broadcast %26 : vector<120x1xf32> to vector<120x12xf32>
    %29 = arith.mulf %28, %27 : vector<120x12xf32>
    %cst_26 = arith.constant dense<0.000000e+00> : vector<12xf32>
    %30 = vector.multi_reduction <add>, %29, %cst_26 [0] : vector<120x12xf32> to vector<12xf32>
    %31 = vector.shape_cast %30 : vector<12xf32> to vector<1x12xf32>
    %c0_27 = arith.constant 0 : index
    %c0_28 = arith.constant 0 : index
    %32 = vector.load %arg10[%c0_27, %c0_28] : memref<1x12xf32, #tpu.memory_space<vmem>>, vector<1x12xf32>
    %33 = arith.addf %31, %32 : vector<1x12xf32>
    %c0_29 = arith.constant 0 : index
    %c0_30 = arith.constant 0 : index
    %c0_31 = arith.constant 0 : index
    %34 = vector.load %arg11[%c0_29, %c0_30, %c0_31] : memref<1x1x12xf32, #tpu.memory_space<vmem>>, vector<1x1x12xf32>
    %35 = vector.shape_cast %34 : vector<1x1x12xf32> to vector<1x12xf32>
    %36 = vector.shape_cast %33 : vector<1x12xf32> to vector<1x1x12xf32>
    tpu.vector_store %arg11[%c0_29, %c0_30, %c0_31], %36 {strides = array<i32>} : memref<1x1x12xf32, #tpu.memory_space<vmem>>, vector<1x1x12xf32>,
    return
  }
  func.func @transform_0(%arg0: i32) -> (i32, i32, i32) {
    %c0_i32 = arith.constant 0 : i32
    %c0_i32_0 = arith.constant 0 : i32
    %c0_i32_1 = arith.constant 0 : i32
    return %arg0, %c0_i32, %c0_i32_0 : i32, i32, i32
  }
  func.func @transform_1(%arg0: i32) -> (i32, i32, i32) {
    %c0_i32 = arith.constant 0 : i32
    %c0_i32_0 = arith.constant 0 : i32
    %c0_i32_1 = arith.constant 0 : i32
    return %arg0, %c0_i32, %c0_i32_0 : i32, i32, i32
  }
  func.func @transform_2(%arg0: i32) -> (i32, i32) {
    %c0_i32 = arith.constant 0 : i32
    %c0_i32_0 = arith.constant 0 : i32
    %c0_i32_1 = arith.constant 0 : i32
    return %c0_i32, %c0_i32_0 : i32, i32
  }
  func.func @transform_3(%arg0: i32) -> (i32, i32) {
    %c0_i32 = arith.constant 0 : i32
    %c0_i32_0 = arith.constant 0 : i32
    %c0_i32_1 = arith.constant 0 : i32
    return %c0_i32, %c0_i32_0 : i32, i32
  }
  func.func @transform_4(%arg0: i32) -> (i32, i32) {
    %c0_i32 = arith.constant 0 : i32
    %c0_i32_0 = arith.constant 0 : i32
    %c0_i32_1 = arith.constant 0 : i32
    return %c0_i32, %c0_i32_0 : i32, i32
  }
  func.func @transform_5(%arg0: i32) -> (i32, i32) {
    %c0_i32 = arith.constant 0 : i32
    %c0_i32_0 = arith.constant 0 : i32
    %c0_i32_1 = arith.constant 0 : i32
    return %c0_i32, %c0_i32_0 : i32, i32
  }
  func.func @transform_6(%arg0: i32) -> (i32, i32) {
    %c0_i32 = arith.constant 0 : i32
    %c0_i32_0 = arith.constant 0 : i32
    %c0_i32_1 = arith.constant 0 : i32
    return %c0_i32, %c0_i32_0 : i32, i32
  }
  func.func @transform_7(%arg0: i32) -> (i32, i32) {
    %c0_i32 = arith.constant 0 : i32
    %c0_i32_0 = arith.constant 0 : i32
    %c0_i32_1 = arith.constant 0 : i32
    return %c0_i32, %c0_i32_0 : i32, i32
  }
  func.func @transform_8(%arg0: i32) -> (i32, i32) {
    %c0_i32 = arith.constant 0 : i32
    %c0_i32_0 = arith.constant 0 : i32
    %c0_i32_1 = arith.constant 0 : i32
    return %c0_i32, %c0_i32_0 : i32, i32
  }
  func.func @transform_9(%arg0: i32) -> (i32, i32) {
    %c0_i32 = arith.constant 0 : i32
    %c0_i32_0 = arith.constant 0 : i32
    %c0_i32_1 = arith.constant 0 : i32
    return %c0_i32, %c0_i32_0 : i32, i32
  }
  func.func @transform_10(%arg0: i32) -> (i32, i32, i32) {
    %c0_i32 = arith.constant 0 : i32
    %c0_i32_0 = arith.constant 0 : i32
    %c0_i32_1 = arith.constant 0 : i32
    return %arg0, %c0_i32, %c0_i32_0 : i32, i32, i32
  }
}

</mosaic_0001>

<llo_original>
// kernel: custom-call.1
$region0: #{custom-call.1}
  %s0 = inlined_call_operand.hbm [shape: c64[8,2,30,30], index: 0, kind: input, shape index: {}]
  %s1 = inlined_call_operand.vmem [shape: f32[8,2,30,30], index: 1, kind: output, shape index: {}]
  %s2 = scalar_lea.hbm %s0, 480
  $region1: #{custom-call.1} parent=0
    #allocation0 [shape = 's32[1]{0}', space=sflag, size = 0x4, scoped, tag = 'scoped memory for custom-call.1']
    %3 = vsyncpa [#allocation0], 0
    %s5 = sshll.u32 %s2, 4
    %s6 = int_to_ptr.hbm [resolvable:$true] %s5
    %s7 = sshll.u32 %s1, 4
    %s8 = int_to_ptr.vmem [resolvable:$true] %s7
    %10 = dma.hbm_to_vmem [thread:$0]  %s6, 7680, %s8, [#allocation0]
    %12 = dma.done [#allocation0], 7680
    %13 = vsyncpa [#allocation0], 1

// kernel: custom-call
$region0: #{custom-call}
  %s0 = inlined_call_operand.hbm [shape: c64[8,2,30,30], index: 0, kind: input, shape index: {}]
  %s1 = inlined_call_operand.vmem [shape: f32[8,2,30,30], index: 1, kind: output, shape index: {}]
  $region1: #{custom-call} parent=0
    #allocation0 [shape = 's32[1]{0}', space=sflag, size = 0x4, scoped, tag = 'scoped memory for custom-call']
    %2 = vsyncpa [#allocation0], 0
    %s4 = sshll.u32 %s0, 4
    %s5 = int_to_ptr.hbm [resolvable:$true] %s4
    %s6 = sshll.u32 %s1, 4
    %s7 = int_to_ptr.vmem [resolvable:$true] %s6
    %9 = dma.hbm_to_vmem [thread:$0]  %s5, 7680, %s7, [#allocation0]
    %11 = dma.done [#allocation0], 7680
    %12 = vsyncpa [#allocation0], 1

// kernel: appnp_net_forward.1
$region0: #{appnp_net_forward.1}
  #allocation0 [shape = 'u32[]', space=smem, size = 0x4, offset = 0x4, fixed_abs, tag = 'smem constant byte address 0x4 - core index']
  #allocation1 [shape = 'u32[72,128]{1,0:T(1,128)}', space=vmem, size = 0x9000, scoped, tag = 'internal scratch']
  #allocation2 [shape = 'f32[1,1]{1,0:T(1,128)S(1)}', space=vmem, size = 0x200, scoped, tag = 'scoped memory for appnp_net_forward.1']
  %s0 = inlined_call_operand.vmem [shape: f32[2,120,4], index: 0, kind: input, shape index: {}]
  %s1 = inlined_call_operand.vmem [shape: f32[2,120,120], index: 1, kind: input, shape index: {}]
  %s2 = inlined_call_operand.vmem [shape: f32[4,32], index: 2, kind: input, shape index: {}]
  %s3 = inlined_call_operand.vmem [shape: f32[1,32], index: 3, kind: input, shape index: {}]
  %s4 = inlined_call_operand.vmem [shape: f32[32,32], index: 4, kind: input, shape index: {}]
  %s5 = inlined_call_operand.vmem [shape: f32[1,32], index: 5, kind: input, shape index: {}]
  %s6 = inlined_call_operand.vmem [shape: f32[32,1], index: 6, kind: input, shape index: {}]
  %s7 = inlined_call_operand.<no memory space> [shape: f32[1,1], index: 7, kind: input, shape index: {}]
  %s8 = inlined_call_operand.vmem [shape: f32[120,12], index: 8, kind: input, shape index: {}]
  %s9 = inlined_call_operand.vmem [shape: f32[1,12], index: 9, kind: input, shape index: {}]
  %s10 = inlined_call_operand.vmem [shape: f32[2,1,12], index: 10, kind: output, shape index: {}]
  %s11 = sld [smem:[#allocation0]]
  $region73: #{appnp_net_forward.1} parent=0
    _
  %s13 = ssub.s32 1, %s11
  %s14 = scalar_select 0, %s13, %s11
  %v15 = vstv %s7
  %16 = vst [vmem:[#allocation2] sm:$0x1] %v15
  loop: start=0, step=1, limit=4
  $region2: #{appnp_net_forward.1} parent=0 // loop_pre_header
    _
  $region3: #{appnp_net_forward.1} parent=0 // loop_header
    %s18 = sphi 0, %s22
    %p19 = scmp.ge.s32.totalorder %s18, 4
    %s28 = sphi 0, %s30
    %s31 = sphi 0, %s28
    %s32 = sphi 0, %s31
    %s48 = sphi 0, %s32
    %s54 = sphi 0, %s56
    %s57 = sphi 0, %s54
    %s58 = sphi 0, %s57
    %s74 = sphi 0, %s58
    %s78 = sphi 0, %s78
    %s80 = sphi 0, %s78
    %s81 = sphi 0, %s80
    %s95 = sphi 0, %s81
    %s99 = sphi 0, %s99
    %s101 = sphi 0, %s99
    %s102 = sphi 0, %s101
    %s116 = sphi 0, %s102
    %s120 = sphi 0, %s120
    %s122 = sphi 0, %s120
    %s123 = sphi 0, %s122
    %s137 = sphi 0, %s123
    %s141 = sphi 0, %s141
    %s143 = sphi 0, %s141
    %s144 = sphi 0, %s143
    %s158 = sphi 0, %s144
    %s162 = sphi 0, %s162
    %s164 = sphi 0, %s162
    %s165 = sphi 0, %s164
    %s179 = sphi 0, %s165
    %s183 = sphi 0, %s183
    %s185 = sphi 0, %s183
    %s186 = sphi 0, %s185
    %s200 = sphi 0, %s186
    %s204 = sphi 0, %s204
    %s206 = sphi 0, %s204
    %s207 = sphi 0, %s206
    %s221 = sphi 0, %s207
    %s225 = sphi 0, %s225
    %s227 = sphi 0, %s225
    %s228 = sphi 0, %s227
    %s242 = sphi 0, %s228
    %s248 = sphi 0, %s250
    %s251 = sphi 0, %s248
    %s252 = sphi 0, %s251
    %s268 = sphi 0, %s252
  $region4: #{appnp_net_forward.1} parent=0 // loop_header_branch
    %21 = sbr.rel (%p19) target = $region8
  $region5: #{appnp_net_forward.1} parent=0 // loop_body
    %s23 = ssub.s32 %s18, 1
    %s24 = ssub.s32 %s18, 2
    %s25 = sadd.s32 %s18, 1
    %s26 = ssub.s32 %s18, %s25
    %p27 = scmp.eq.s32.totalorder %s26, 0
    %s29 = sadd.s32 %s28, 1
    %s30 = scalar_select %p27, %s28, %s29
    %p33 = pneg %p27
    %p34 = scmp.eq.s32.totalorder %s18, 1
    %p35 = por %p33, %p34
    %p36 = scmp.ne.s32.totalorder %s28, %s31
    %p37 = scmp.eq.s32.totalorder %s18, 0
    %p38 = por %p36, %p37
    %p39 = scmp.ne.s32.totalorder %s28, %s31
    %p40 = scmp.eq.s32.totalorder %s23, 1
    %p41 = por %p39, %p40
    %p42 = scmp.ne.s32.totalorder %s31, %s32
    %p43 = scmp.eq.s32.totalorder %s23, 0
    %p44 = por %p42, %p43
    %p45 = scmp.ne.s32.totalorder %s31, %s32
    %p46 = scmp.eq.s32.totalorder %s24, 1
    %p47 = por %p45, %p46
    %p49 = scmp.ne.s32.totalorder %s32, %s48
    %p50 = scmp.eq.s32.totalorder %s24, 0
    %p51 = por %p49, %p50
    %s52 = ssub.s32 %s18, %s25
    %p53 = scmp.eq.s32.totalorder %s52, 0
    %s55 = sadd.s32 %s54, 1
    %s56 = scalar_select %p53, %s54, %s55
    %p59 = pneg %p53
    %p60 = scmp.eq.s32.totalorder %s18, 1
    %p61 = por %p59, %p60
    %p62 = scmp.ne.s32.totalorder %s54, %s57
    %p63 = scmp.eq.s32.totalorder %s18, 0
    %p64 = por %p62, %p63
    %p65 = scmp.ne.s32.totalorder %s54, %s57
    %p66 = scmp.eq.s32.totalorder %s23, 1
    %p67 = por %p65, %p66
    %p68 = scmp.ne.s32.totalorder %s57, %s58
    %p69 = scmp.eq.s32.totalorder %s23, 0
    %p70 = por %p68, %p69
    %p71 = scmp.ne.s32.totalorder %s57, %s58
    %p72 = scmp.eq.s32.totalorder %s24, 1
    %p73 = por %p71, %p72
    %p75 = scmp.ne.s32.totalorder %s58, %s74
    %p76 = scmp.eq.s32.totalorder %s24, 0
    %p77 = por %p75, %p76
    %s79 = sadd.s32 %s78, 1
    %p82 = scmp.eq.s32.totalorder %s18, 1
    %p83 = scmp.ne.s32.totalorder %s78, %s80
    %p84 = scmp.eq.s32.totalorder %s18, 0
    %p85 = por %p83, %p84
    %p86 = scmp.ne.s32.totalorder %s78, %s80
    %p87 = scmp.eq.s32.totalorder %s23, 1
    %p88 = por %p86, %p87
    %p89 = scmp.ne.s32.totalorder %s80, %s81
    %p90 = scmp.eq.s32.totalorder %s23, 0
    %p91 = por %p89, %p90
    %p92 = scmp.ne.s32.totalorder %s80, %s81
    %p93 = scmp.eq.s32.totalorder %s24, 1
    %p94 = por %p92, %p93
    %p96 = scmp.ne.s32.totalorder %s81, %s95
    %p97 = scmp.eq.s32.totalorder %s24, 0
    %p98 = por %p96, %p97
    %s100 = sadd.s32 %s99, 1
    %p103 = scmp.eq.s32.totalorder %s18, 1
    %p104 = scmp.ne.s32.totalorder %s99, %s101
    %p105 = scmp.eq.s32.totalorder %s18, 0
    %p106 = por %p104, %p105
    %p107 = scmp.ne.s32.totalorder %s99, %s101
    %p108 = scmp.eq.s32.totalorder %s23, 1
    %p109 = por %p107, %p108
    %p110 = scmp.ne.s32.totalorder %s101, %s102
    %p111 = scmp.eq.s32.totalorder %s23, 0
    %p112 = por %p110, %p111
    %p113 = scmp.ne.s32.totalorder %s101, %s102
    %p114 = scmp.eq.s32.totalorder %s24, 1
    %p115 = por %p113, %p114
    %p117 = scmp.ne.s32.totalorder %s102, %s116
    %p118 = scmp.eq.s32.totalorder %s24, 0
    %p119 = por %p117, %p118
    %s121 = sadd.s32 %s120, 1
    %p124 = scmp.eq.s32.totalorder %s18, 1
    %p125 = scmp.ne.s32.totalorder %s120, %s122
    %p126 = scmp.eq.s32.totalorder %s18, 0
    %p127 = por %p125, %p126
    %p128 = scmp.ne.s32.totalorder %s120, %s122
    %p129 = scmp.eq.s32.totalorder %s23, 1
    %p130 = por %p128, %p129
    %p131 = scmp.ne.s32.totalorder %s122, %s123
    %p132 = scmp.eq.s32.totalorder %s23, 0
    %p133 = por %p131, %p132
    %p134 = scmp.ne.s32.totalorder %s122, %s123
    %p135 = scmp.eq.s32.totalorder %s24, 1
    %p136 = por %p134, %p135
    %p138 = scmp.ne.s32.totalorder %s123, %s137
    %p139 = scmp.eq.s32.totalorder %s24, 0
    %p140 = por %p138, %p139
    %s142 = sadd.s32 %s141, 1
    %p145 = scmp.eq.s32.totalorder %s18, 1
    %p146 = scmp.ne.s32.totalorder %s141, %s143
    %p147 = scmp.eq.s32.totalorder %s18, 0
    %p148 = por %p146, %p147
    %p149 = scmp.ne.s32.totalorder %s141, %s143
    %p150 = scmp.eq.s32.totalorder %s23, 1
    %p151 = por %p149, %p150
    %p152 = scmp.ne.s32.totalorder %s143, %s144
    %p153 = scmp.eq.s32.totalorder %s23, 0
    %p154 = por %p152, %p153
    %p155 = scmp.ne.s32.totalorder %s143, %s144
    %p156 = scmp.eq.s32.totalorder %s24, 1
    %p157 = por %p155, %p156
    %p159 = scmp.ne.s32.totalorder %s144, %s158
    %p160 = scmp.eq.s32.totalorder %s24, 0
    %p161 = por %p159, %p160
    %s163 = sadd.s32 %s162, 1
    %p166 = scmp.eq.s32.totalorder %s18, 1
    %p167 = scmp.ne.s32.totalorder %s162, %s164
    %p168 = scmp.eq.s32.totalorder %s18, 0
    %p169 = por %p167, %p168
    %p170 = scmp.ne.s32.totalorder %s162, %s164
    %p171 = scmp.eq.s32.totalorder %s23, 1
    %p172 = por %p170, %p171
    %p173 = scmp.ne.s32.totalorder %s164, %s165
    %p174 = scmp.eq.s32.totalorder %s23, 0
    %p175 = por %p173, %p174
    %p176 = scmp.ne.s32.totalorder %s164, %s165
    %p177 = scmp.eq.s32.totalorder %s24, 1
    %p178 = por %p176, %p177
    %p180 = scmp.ne.s32.totalorder %s165, %s179
    %p181 = scmp.eq.s32.totalorder %s24, 0
    %p182 = por %p180, %p181
    %s184 = sadd.s32 %s183, 1
    %p187 = scmp.eq.s32.totalorder %s18, 1
    %p188 = scmp.ne.s32.totalorder %s183, %s185
    %p189 = scmp.eq.s32.totalorder %s18, 0
    %p190 = por %p188, %p189
    %p191 = scmp.ne.s32.totalorder %s183, %s185
    %p192 = scmp.eq.s32.totalorder %s23, 1
    %p193 = por %p191, %p192
    %p194 = scmp.ne.s32.totalorder %s185, %s186
    %p195 = scmp.eq.s32.totalorder %s23, 0
    %p196 = por %p194, %p195
    %p197 = scmp.ne.s32.totalorder %s185, %s186
    %p198 = scmp.eq.s32.totalorder %s24, 1
    %p199 = por %p197, %p198
    %p201 = scmp.ne.s32.totalorder %s186, %s200
    %p202 = scmp.eq.s32.totalorder %s24, 0
    %p203 = por %p201, %p202
    %s205 = sadd.s32 %s204, 1
    %p208 = scmp.eq.s32.totalorder %s18, 1
    %p209 = scmp.ne.s32.totalorder %s204, %s206
    %p210 = scmp.eq.s32.totalorder %s18, 0
    %p211 = por %p209, %p210
    %p212 = scmp.ne.s32.totalorder %s204, %s206
    %p213 = scmp.eq.s32.totalorder %s23, 1
    %p214 = por %p212, %p213
    %p215 = scmp.ne.s32.totalorder %s206, %s207
    %p216 = scmp.eq.s32.totalorder %s23, 0
    %p217 = por %p215, %p216
    %p218 = scmp.ne.s32.totalorder %s206, %s207
    %p219 = scmp.eq.s32.totalorder %s24, 1
    %p220 = por %p218, %p219
    %p222 = scmp.ne.s32.totalorder %s207, %s221
    %p223 = scmp.eq.s32.totalorder %s24, 0
    %p224 = por %p222, %p223
    %s226 = sadd.s32 %s225, 1
    %p229 = scmp.eq.s32.totalorder %s18, 1
    %p230 = scmp.ne.s32.totalorder %s225, %s227
    %p231 = scmp.eq.s32.totalorder %s18, 0
    %p232 = por %p230, %p231
    %p233 = scmp.ne.s32.totalorder %s225, %s227
    %p234 = scmp.eq.s32.totalorder %s23, 1
    %p235 = por %p233, %p234
    %p236 = scmp.ne.s32.totalorder %s227, %s228
    %p237 = scmp.eq.s32.totalorder %s23, 0
    %p238 = por %p236, %p237
    %p239 = scmp.ne.s32.totalorder %s227, %s228
    %p240 = scmp.eq.s32.totalorder %s24, 1
    %p241 = por %p239, %p240
    %p243 = scmp.ne.s32.totalorder %s228, %s242
    %p244 = scmp.eq.s32.totalorder %s24, 0
    %p245 = por %p243, %p244
    %s246 = ssub.s32 %s18, %s25
    %p247 = scmp.eq.s32.totalorder %s246, 0
    %s249 = sadd.s32 %s248, 1
    %s250 = scalar_select %p247, %s248, %s249
    %p253 = pneg %p247
    %p254 = scmp.eq.s32.totalorder %s18, 1
    %p255 = por %p253, %p254
    %p256 = scmp.ne.s32.totalorder %s248, %s251
    %p257 = scmp.eq.s32.totalorder %s18, 0
    %p258 = por %p256, %p257
    %p259 = scmp.ne.s32.totalorder %s248, %s251
    %p260 = scmp.eq.s32.totalorder %s23, 1
    %p261 = por %p259, %p260
    %p262 = scmp.ne.s32.totalorder %s251, %s252
    %p263 = scmp.eq.s32.totalorder %s23, 0
    %p264 = por %p262, %p263
    %p265 = scmp.ne.s32.totalorder %s251, %s252
    %p266 = scmp.eq.s32.totalorder %s24, 1
    %p267 = por %p265, %p266
    %p269 = scmp.ne.s32.totalorder %s252, %s268
    %p270 = scmp.eq.s32.totalorder %s24, 0
    %p271 = por %p269, %p270
    %p272 = scmp.le.s32.totalorder 1, %s18
    %p273 = scmp.lt.s32.totalorder %s18, 3
    %p274 = pnand %p272, %p273
    %p275 = pneg %p274
    // Predicated region
    $region9: #{appnp_net_forward.1} parent=5 // pred_check
      _
    $region10: #{appnp_net_forward.1} parent=5 // pred_check_branch
      %277 = sbr.rel (%p274) target = $region12
    $region11: #{appnp_net_forward.1} parent=5 // pred_region
      %s278 = ssub.s32 %s18, 1
      // Predicated region
      $region13: #{appnp_net_forward.1} parent=11 // pred_check
        %p279 = pneg %p91
      $region14: #{appnp_net_forward.1} parent=11 // pred_check_branch
        %281 = sbr.rel (%p279) target = $region16
      $region15: #{appnp_net_forward.1} parent=11 // pred_region
        _
      $region16: #{appnp_net_forward.1} parent=11 // pred_fallthru
        _
      // Predicated region
      $region17: #{appnp_net_forward.1} parent=11 // pred_check
        %p282 = pneg %p112
      $region18: #{appnp_net_forward.1} parent=11 // pred_check_branch
        %284 = sbr.rel (%p282) target = $region20
      $region19: #{appnp_net_forward.1} parent=11 // pred_region
        _
      $region20: #{appnp_net_forward.1} parent=11 // pred_fallthru
        _
      // Predicated region
      $region21: #{appnp_net_forward.1} parent=11 // pred_check
        %p285 = pneg %p133
      $region22: #{appnp_net_forward.1} parent=11 // pred_check_branch
        %287 = sbr.rel (%p285) target = $region24
      $region23: #{appnp_net_forward.1} parent=11 // pred_region
        _
      $region24: #{appnp_net_forward.1} parent=11 // pred_fallthru
        _
      // Predicated region
      $region25: #{appnp_net_forward.1} parent=11 // pred_check
        %p288 = pneg %p154
      $region26: #{appnp_net_forward.1} parent=11 // pred_check_branch
        %290 = sbr.rel (%p288) target = $region28
      $region27: #{appnp_net_forward.1} parent=11 // pred_region
        _
      $region28: #{appnp_net_forward.1} parent=11 // pred_fallthru
        _
      // Predicated region
      $region29: #{appnp_net_forward.1} parent=11 // pred_check
        %p291 = pneg %p175
      $region30: #{appnp_net_forward.1} parent=11 // pred_check_branch
        %293 = sbr.rel (%p291) target = $region32
      $region31: #{appnp_net_forward.1} parent=11 // pred_region
        _
      $region32: #{appnp_net_forward.1} parent=11 // pred_fallthru
        _
      // Predicated region
      $region33: #{appnp_net_forward.1} parent=11 // pred_check
        %p294 = pneg %p196
      $region34: #{appnp_net_forward.1} parent=11 // pred_check_branch
        %296 = sbr.rel (%p294) target = $region36
      $region35: #{appnp_net_forward.1} parent=11 // pred_region
        _
      $region36: #{appnp_net_forward.1} parent=11 // pred_fallthru
        _
      // Predicated region
      $region37: #{appnp_net_forward.1} parent=11 // pred_check
        %p297 = pneg %p217
      $region38: #{appnp_net_forward.1} parent=11 // pred_check_branch
        %299 = sbr.rel (%p297) target = $region40
      $region39: #{appnp_net_forward.1} parent=11 // pred_region
        _
      $region40: #{appnp_net_forward.1} parent=11 // pred_fallthru
        _
      // Predicated region
      $region41: #{appnp_net_forward.1} parent=11 // pred_check
        %p300 = pneg %p238
      $region42: #{appnp_net_forward.1} parent=11 // pred_check_branch
        %302 = sbr.rel (%p300) target = $region44
      $region43: #{appnp_net_forward.1} parent=11 // pred_region
        _
      $region44: #{appnp_net_forward.1} parent=11 // pred_fallthru
        _
    $region12: #{appnp_net_forward.1} parent=5 // pred_fallthru
      _
    %p303 = scmp.lt.s32.totalorder %s18, 2
    // Predicated region
    $region45: #{appnp_net_forward.1} parent=5 // pred_check
      %p304 = pneg %p303
    $region46: #{appnp_net_forward.1} parent=5 // pred_check_branch
      %306 = sbr.rel (%p304) target = $region48
    $region47: #{appnp_net_forward.1} parent=5 // pred_region
      // Predicated region
      $region49: #{appnp_net_forward.1} parent=47 // pred_check
        %p307 = pneg %p38
      $region50: #{appnp_net_forward.1} parent=47 // pred_check_branch
        %309 = sbr.rel (%p307) target = $region52
      $region51: #{appnp_net_forward.1} parent=47 // pred_region
        %p310 = scmp.lt.s32.totalorder %s18, 1
        %s311 = scalar_select %p310, %s18, 1
        %s312 = smul.addr %s311, 15
        %s313 = smul.addr %s312, 8
        %s314 = scalar_lea.vmem %s0, %s313
      $region52: #{appnp_net_forward.1} parent=47 // pred_fallthru
        _
      // Predicated region
      $region53: #{appnp_net_forward.1} parent=47 // pred_check
        %p315 = pneg %p64
      $region54: #{appnp_net_forward.1} parent=47 // pred_check_branch
        %317 = sbr.rel (%p315) target = $region56
      $region55: #{appnp_net_forward.1} parent=47 // pred_region
        %p318 = scmp.lt.s32.totalorder %s18, 1
        %s319 = scalar_select %p318, %s18, 1
        %s320 = smul.addr %s319, 15
        %s321 = smul.addr %s320, 8
        %s322 = scalar_lea.vmem %s1, %s321
      $region56: #{appnp_net_forward.1} parent=47 // pred_fallthru
        _
    $region48: #{appnp_net_forward.1} parent=5 // pred_fallthru
      _
    %p323 = scmp.le.s32.totalorder 1, %s18
    %p324 = scmp.lt.s32.totalorder %s18, 3
    %p325 = pnand %p323, %p324
    %p326 = pneg %p325
    // Predicated region
    $region57: #{appnp_net_forward.1} parent=5 // pred_check
      _
    $region58: #{appnp_net_forward.1} parent=5 // pred_check_branch
      %328 = sbr.rel (%p325) target = $region60
    $region59: #{appnp_net_forward.1} parent=5 // pred_region
      %s329 = ssub.s32 %s18, 1
      %p330 = scmp.lt.s32.totalorder %s23, 1
      %s331 = scalar_select %p330, %s23, 1
      %s332 = smul.addr %s331, 15
      %s333 = smul.addr %s332, 8
      %s334 = scalar_lea.vmem %s0, %s333
      %p335 = pneg %p44
      %p336 = pneg %p41
      %p337 = scmp.lt.s32.totalorder %s23, 1
      %s338 = scalar_select %p337, %s23, 1
      %s339 = smul.addr %s338, 15
      %s340 = smul.addr %s339, 8
      %s341 = scalar_lea.vmem %s1, %s340
      %p342 = pneg %p70
      %p343 = pneg %p67
      %p344 = pneg %p91
      %p345 = pneg %p88
      %p346 = pneg %p112
      %p347 = pneg %p109
      %p348 = pneg %p133
      %p349 = pneg %p130
      %p350 = pneg %p154
      %p351 = pneg %p151
      %p352 = pneg %p175
      %p353 = pneg %p172
      %p354 = pneg %p196
      %p355 = pneg %p193
      %p356 = pneg %p217
      %p357 = pneg %p214
      %p358 = pneg %p238
      %p359 = pneg %p235
      %p360 = pneg %p264
      %p361 = pneg %p261
      %p362 = scmp.lt.s32.totalorder %s23, 1
      %s363 = scalar_select %p362, %s23, 1
      %s364 = scalar_lea.vmem %s10, %s363
      %p365 = scmp.lt.s32.totalorder %s23, 1
      %s366 = scalar_select %p365, %s23, 1
      %s367 = smul.addr %s366, 15
      %s368 = smul.addr %s367, 8
      %s369 = scalar_lea.vmem %s0, %s368
      %p370 = scmp.lt.s32.totalorder %s23, 1
      %s371 = scalar_select %p370, %s23, 1
      %s372 = smul.addr %s371, 15
      %s373 = smul.addr %s372, 8
      %s374 = scalar_lea.vmem %s1, %s373
      %p375 = scmp.lt.s32.totalorder %s23, 1
      %s376 = scalar_select %p375, %s23, 1
      %s377 = scalar_lea.vmem %s10, %s376
      %v378 = vld [vmem:[%s369] sm:$0xff]
      %v379 = vld [vmem:[%s369 + $0x8] sm:$0xff]
      %v380 = vld [vmem:[%s369 + $0x10] sm:$0xff]
      %v381 = vld [vmem:[%s369 + $0x18] sm:$0xff]
      %v382 = vld [vmem:[%s369 + $0x20] sm:$0xff]
      %v383 = vld [vmem:[%s369 + $0x28] sm:$0xff]
      %v384 = vld [vmem:[%s369 + $0x30] sm:$0xff]
      %v385 = vld [vmem:[%s369 + $0x38] sm:$0xff]
      %v386 = vld [vmem:[%s369 + $0x40] sm:$0xff]
      %v387 = vld [vmem:[%s369 + $0x48] sm:$0xff]
      %v388 = vld [vmem:[%s369 + $0x50] sm:$0xff]
      %v389 = vld [vmem:[%s369 + $0x58] sm:$0xff]
      %v390 = vld [vmem:[%s369 + $0x60] sm:$0xff]
      %v391 = vld [vmem:[%s369 + $0x68] sm:$0xff]
      %v392 = vld [vmem:[%s369 + $0x70] sm:$0xff]
      %v393 = vld [vmem:[%s374] sm:$0xff]
      %v394 = vld [vmem:[%s374 + $0x8] sm:$0xff]
      %v395 = vld [vmem:[%s374 + $0x10] sm:$0xff]
      %v396 = vld [vmem:[%s374 + $0x18] sm:$0xff]
      %v397 = vld [vmem:[%s374 + $0x20] sm:$0xff]
      %v398 = vld [vmem:[%s374 + $0x28] sm:$0xff]
      %v399 = vld [vmem:[%s374 + $0x30] sm:$0xff]
      %v400 = vld [vmem:[%s374 + $0x38] sm:$0xff]
      %v401 = vld [vmem:[%s374 + $0x40] sm:$0xff]
      %v402 = vld [vmem:[%s374 + $0x48] sm:$0xff]
      %v403 = vld [vmem:[%s374 + $0x50] sm:$0xff]
      %v404 = vld [vmem:[%s374 + $0x58] sm:$0xff]
      %v405 = vld [vmem:[%s374 + $0x60] sm:$0xff]
      %v406 = vld [vmem:[%s374 + $0x68] sm:$0xff]
      %v407 = vld [vmem:[%s374 + $0x70] sm:$0xff]
      %v408 = vld [vmem:[%s2] sm:$0xf]
      %v409 = vld [vmem:[%s3] sm:$0x1]
      %v411 = vperm.slane %v409, 0
      %vm413 = vcmask 31744
      %v415 = vsel %vm413, %v378, 0
      %v418 = vsel %vm413, %v379, 0
      %v421 = vsel %vm413, %v380, 0
      %v424 = vsel %vm413, %v381, 0
      %v427 = vsel %vm413, %v382, 0
      %v430 = vsel %vm413, %v383, 0
      %v433 = vsel %vm413, %v384, 0
      %v436 = vsel %vm413, %v385, 0
      %v439 = vsel %vm413, %v386, 0
      %v442 = vsel %vm413, %v387, 0
      %v445 = vsel %vm413, %v388, 0
      %v448 = vsel %vm413, %v389, 0
      %v451 = vsel %vm413, %v390, 0
      %v454 = vsel %vm413, %v391, 0
      %v457 = vsel %vm413, %v392, 0
      %vm459 = vcmask 1043456
      %v461 = vsel %vm459, %v408, 0
      %463 = vmatpush.msra.mxu0 0.0
      %464 = vmatpush.msra.mxu0 0.0
      %465 = vmatpush.msra.mxu0 0.0
      %466 = vmatpush.msra.mxu0 0.0
      %467 = vmatpush.msra.mxu0 0.0
      %468 = vmatpush.msra.mxu0 0.0
      %469 = vmatpush.msra.mxu0 0.0
      %470 = vmatpush.msra.mxu0 0.0
      %471 = vmatpush.msra.mxu0 0.0
      %472 = vmatpush.msra.mxu0 0.0
      %473 = vmatpush.msra.mxu0 0.0
      %474 = vmatpush.msra.mxu0 0.0
      %475 = vmatpush.msra.mxu0 0.0
      %476 = vmatpush.msra.mxu0 0.0
      %477 = vmatpush.msra.mxu0 0.0
      %478 = vmatpush.msra.mxu0 %v461
      %479 = vmatmul.f32.gmra.mxu0 %v415
      %v480 = vpop.f32.mrf.mxu0
      %v481 = vadd.f32 %v411, %v480
      %482 = vmatmul.f32.gmra.mxu0 %v418
      %v483 = vpop.f32.mrf.mxu0
      %v484 = vadd.f32 %v411, %v483
      %485 = vmatmul.f32.gmra.mxu0 %v421
      %v486 = vpop.f32.mrf.mxu0
      %v487 = vadd.f32 %v411, %v486
      %488 = vmatmul.f32.gmra.mxu0 %v424
      %v489 = vpop.f32.mrf.mxu0
      %v490 = vadd.f32 %v411, %v489
      %491 = vmatmul.f32.gmra.mxu0 %v427
      %v492 = vpop.f32.mrf.mxu0
      %v493 = vadd.f32 %v411, %v492
      %494 = vmatmul.f32.gmra.mxu0 %v430
      %v495 = vpop.f32.mrf.mxu0
      %v496 = vadd.f32 %v411, %v495
      %497 = vmatmul.f32.gmra.mxu0 %v433
      %v498 = vpop.f32.mrf.mxu0
      %v499 = vadd.f32 %v411, %v498
      %500 = vmatmul.f32.gmra.mxu0 %v436
      %v501 = vpop.f32.mrf.mxu0
      %v502 = vadd.f32 %v411, %v501
      %503 = vmatmul.f32.gmra.mxu0 %v439
      %v504 = vpop.f32.mrf.mxu0
      %v505 = vadd.f32 %v411, %v504
      %506 = vmatmul.f32.gmra.mxu0 %v442
      %v507 = vpop.f32.mrf.mxu0
      %v508 = vadd.f32 %v411, %v507
      %509 = vmatmul.f32.gmra.mxu0 %v445
      %v510 = vpop.f32.mrf.mxu0
      %v511 = vadd.f32 %v411, %v510
      %512 = vmatmul.f32.gmra.mxu0 %v448
      %v513 = vpop.f32.mrf.mxu0
      %v514 = vadd.f32 %v411, %v513
      %515 = vmatmul.f32.gmra.mxu0 %v451
      %v516 = vpop.f32.mrf.mxu0
      %v517 = vadd.f32 %v411, %v516
      %518 = vmatmul.f32.gmra.mxu0 %v454
      %v519 = vpop.f32.mrf.mxu0
      %v520 = vadd.f32 %v411, %v519
      %521 = vmatmul.f32.gmra.mxu0 %v457
      %v522 = vpop.f32.mrf.mxu0
      %v523 = vadd.f32 %v411, %v522
      %524 = vdwg.mxu0
      %v525 = vmax.f32 %v481, 0.0
      %v526 = vmax.f32 %v484, 0.0
      %v527 = vmax.f32 %v487, 0.0
      %v528 = vmax.f32 %v490, 0.0
      %v529 = vmax.f32 %v493, 0.0
      %v530 = vmax.f32 %v496, 0.0
      %v531 = vmax.f32 %v499, 0.0
      %v532 = vmax.f32 %v502, 0.0
      %v533 = vmax.f32 %v505, 0.0
      %v534 = vmax.f32 %v508, 0.0
      %v535 = vmax.f32 %v511, 0.0
      %v536 = vmax.f32 %v514, 0.0
      %v537 = vmax.f32 %v517, 0.0
      %v538 = vmax.f32 %v520, 0.0
      %v539 = vmax.f32 %v523, 0.0
      %vm540 = vcmask 982016
      %v542 = vsel %vm540, %v393, 0
      %v545 = vsel %vm540, %v394, 0
      %v548 = vsel %vm540, %v395, 0
      %v551 = vsel %vm540, %v396, 0
      %v554 = vsel %vm540, %v397, 0
      %v557 = vsel %vm540, %v398, 0
      %v560 = vsel %vm540, %v399, 0
      %v563 = vsel %vm540, %v400, 0
      %v566 = vsel %vm540, %v401, 0
      %v569 = vsel %vm540, %v402, 0
      %v572 = vsel %vm540, %v403, 0
      %v575 = vsel %vm540, %v404, 0
      %v578 = vsel %vm540, %v405, 0
      %v581 = vsel %vm540, %v406, 0
      %v584 = vsel %vm540, %v407, 0
      %586 = vmatpush.msra.mxu0 0.0
      %587 = vmatpush.msra.mxu0 %v539
      %588 = vmatpush.msra.mxu0 %v538
      %589 = vmatpush.msra.mxu0 %v537
      %590 = vmatpush.msra.mxu0 %v536
      %591 = vmatpush.msra.mxu0 %v535
      %592 = vmatpush.msra.mxu0 %v534
      %593 = vmatpush.msra.mxu0 %v533
      %594 = vmatpush.msra.mxu0 %v532
      %595 = vmatpush.msra.mxu0 %v531
      %596 = vmatpush.msra.mxu0 %v530
      %597 = vmatpush.msra.mxu0 %v529
      %598 = vmatpush.msra.mxu0 %v528
      %599 = vmatpush.msra.mxu0 %v527
      %600 = vmatpush.msra.mxu0 %v526
      %601 = vmatpush.msra.mxu0 %v525
      %602 = vmatmul.f32.gmra.mxu0 %v542
      %v603 = vpop.f32.mrf.mxu0
      %v604 = vadd.f32 0.0, %v603
      %605 = vmatmul.f32.gmra.mxu0 %v545
      %v606 = vpop.f32.mrf.mxu0
      %v607 = vadd.f32 0.0, %v606
      %608 = vmatmul.f32.gmra.mxu0 %v548
      %v609 = vpop.f32.mrf.mxu0
      %v610 = vadd.f32 0.0, %v609
      %611 = vmatmul.f32.gmra.mxu0 %v551
      %v612 = vpop.f32.mrf.mxu0
      %v613 = vadd.f32 0.0, %v612
      %614 = vmatmul.f32.gmra.mxu0 %v554
      %v615 = vpop.f32.mrf.mxu0
      %v616 = vadd.f32 0.0, %v615
      %617 = vmatmul.f32.gmra.mxu0 %v557
      %v618 = vpop.f32.mrf.mxu0
      %v619 = vadd.f32 0.0, %v618
      %620 = vmatmul.f32.gmra.mxu0 %v560
      %v621 = vpop.f32.mrf.mxu0
      %v622 = vadd.f32 0.0, %v621
      %623 = vmatmul.f32.gmra.mxu0 %v563
      %v624 = vpop.f32.mrf.mxu0
      %v625 = vadd.f32 0.0, %v624
      %626 = vmatmul.f32.gmra.mxu0 %v566
      %v627 = vpop.f32.mrf.mxu0
      %v628 = vadd.f32 0.0, %v627
      %629 = vmatmul.f32.gmra.mxu0 %v569
      %v630 = vpop.f32.mrf.mxu0
      %v631 = vadd.f32 0.0, %v630
      %632 = vmatmul.f32.gmra.mxu0 %v572
      %v633 = vpop.f32.mrf.mxu0
      %v634 = vadd.f32 0.0, %v633
      %635 = vmatmul.f32.gmra.mxu0 %v575
      %v636 = vpop.f32.mrf.mxu0
      %v637 = vadd.f32 0.0, %v636
      %638 = vmatmul.f32.gmra.mxu0 %v578
      %v639 = vpop.f32.mrf.mxu0
      %v640 = vadd.f32 0.0, %v639
      %641 = vmatmul.f32.gmra.mxu0 %v581
      %v642 = vpop.f32.mrf.mxu0
      %v643 = vadd.f32 0.0, %v642
      %644 = vmatmul.f32.gmra.mxu0 %v584
      %v645 = vpop.f32.mrf.mxu0
      %v646 = vadd.f32 0.0, %v645
      %647 = vdwg.mxu0
      %v648 = vld [vmem:[%s4] sm:$0xff]
      %v649 = vld [vmem:[%s4 + $0x8] sm:$0xff]
      %v650 = vld [vmem:[%s4 + $0x10] sm:$0xff]
      %v651 = vld [vmem:[%s4 + $0x18] sm:$0xff]
      %v652 = vld [vmem:[%s5] sm:$0x1]
      %v654 = vperm.slane %v652, 0
      %vm656 = vcmask 261120
      %v658 = vsel %vm656, %v604, 0
      %v661 = vsel %vm656, %v607, 0
      %v664 = vsel %vm656, %v610, 0
      %v667 = vsel %vm656, %v613, 0
      %v670 = vsel %vm656, %v616, 0
      %v673 = vsel %vm656, %v619, 0
      %v676 = vsel %vm656, %v622, 0
      %v679 = vsel %vm656, %v625, 0
      %v682 = vsel %vm656, %v628, 0
      %v685 = vsel %vm656, %v631, 0
      %v688 = vsel %vm656, %v634, 0
      %v691 = vsel %vm656, %v637, 0
      %v694 = vsel %vm656, %v640, 0
      %v697 = vsel %vm656, %v643, 0
      %v700 = vsel %vm656, %v646, 0
      %702 = vmatpush.msra.mxu0 0.0
      %703 = vmatpush.msra.mxu0 0.0
      %704 = vmatpush.msra.mxu0 0.0
      %705 = vmatpush.msra.mxu0 0.0
      %706 = vmatpush.msra.mxu0 0.0
      %707 = vmatpush.msra.mxu0 0.0
      %708 = vmatpush.msra.mxu0 0.0
      %709 = vmatpush.msra.mxu0 0.0
      %710 = vmatpush.msra.mxu0 0.0
      %711 = vmatpush.msra.mxu0 0.0
      %712 = vmatpush.msra.mxu0 0.0
      %713 = vmatpush.msra.mxu0 0.0
      %714 = vmatpush.msra.mxu0 %v651
      %715 = vmatpush.msra.mxu0 %v650
      %716 = vmatpush.msra.mxu0 %v649
      %717 = vmatpush.msra.mxu0 %v648
      %718 = vmatmul.f32.gmra.mxu0 %v658
      %v719 = vpop.f32.mrf.mxu0
      %v720 = vadd.f32 %v654, %v719
      %721 = vmatmul.f32.gmra.mxu0 %v661
      %v722 = vpop.f32.mrf.mxu0
      %v723 = vadd.f32 %v654, %v722
      %724 = vmatmul.f32.gmra.mxu0 %v664
      %v725 = vpop.f32.mrf.mxu0
      %v726 = vadd.f32 %v654, %v725
      %727 = vmatmul.f32.gmra.mxu0 %v667
      %v728 = vpop.f32.mrf.mxu0
      %v729 = vadd.f32 %v654, %v728
      %730 = vmatmul.f32.gmra.mxu0 %v670
      %v731 = vpop.f32.mrf.mxu0
      %v732 = vadd.f32 %v654, %v731
      %733 = vmatmul.f32.gmra.mxu0 %v673
      %v734 = vpop.f32.mrf.mxu0
      %v735 = vadd.f32 %v654, %v734
      %736 = vmatmul.f32.gmra.mxu0 %v676
      %v737 = vpop.f32.mrf.mxu0
      %v738 = vadd.f32 %v654, %v737
      %739 = vmatmul.f32.gmra.mxu0 %v679
      %v740 = vpop.f32.mrf.mxu0
      %v741 = vadd.f32 %v654, %v740
      %742 = vmatmul.f32.gmra.mxu0 %v682
      %v743 = vpop.f32.mrf.mxu0
      %v744 = vadd.f32 %v654, %v743
      %745 = vmatmul.f32.gmra.mxu0 %v685
      %v746 = vpop.f32.mrf.mxu0
      %v747 = vadd.f32 %v654, %v746
      %748 = vmatmul.f32.gmra.mxu0 %v688
      %v749 = vpop.f32.mrf.mxu0
      %v750 = vadd.f32 %v654, %v749
      %751 = vmatmul.f32.gmra.mxu0 %v691
      %v752 = vpop.f32.mrf.mxu0
      %v753 = vadd.f32 %v654, %v752
      %754 = vmatmul.f32.gmra.mxu0 %v694
      %v755 = vpop.f32.mrf.mxu0
      %v756 = vadd.f32 %v654, %v755
      %757 = vmatmul.f32.gmra.mxu0 %v697
      %v758 = vpop.f32.mrf.mxu0
      %v759 = vadd.f32 %v654, %v758
      %760 = vmatmul.f32.gmra.mxu0 %v700
      %v761 = vpop.f32.mrf.mxu0
      %v762 = vadd.f32 %v654, %v761
      %763 = vdwg.mxu0
      %v764 = vmax.f32 %v720, 0.0
      %v765 = vmax.f32 %v723, 0.0
      %v766 = vmax.f32 %v726, 0.0
      %v767 = vmax.f32 %v729, 0.0
      %v768 = vmax.f32 %v732, 0.0
      %v769 = vmax.f32 %v735, 0.0
      %v770 = vmax.f32 %v738, 0.0
      %v771 = vmax.f32 %v741, 0.0
      %v772 = vmax.f32 %v744, 0.0
      %v773 = vmax.f32 %v747, 0.0
      %v774 = vmax.f32 %v750, 0.0
      %v775 = vmax.f32 %v753, 0.0
      %v776 = vmax.f32 %v756, 0.0
      %v777 = vmax.f32 %v759, 0.0
      %v778 = vmax.f32 %v762, 0.0
      %779 = vmatpush.msra.mxu0 0.0
      %780 = vmatpush.msra.mxu0 %v778
      %781 = vmatpush.msra.mxu0 %v777
      %782 = vmatpush.msra.mxu0 %v776
      %783 = vmatpush.msra.mxu0 %v775
      %784 = vmatpush.msra.mxu0 %v774
      %785 = vmatpush.msra.mxu0 %v773
      %786 = vmatpush.msra.mxu0 %v772
      %787 = vmatpush.msra.mxu0 %v771
      %788 = vmatpush.msra.mxu0 %v770
      %789 = vmatpush.msra.mxu0 %v769
      %790 = vmatpush.msra.mxu0 %v768
      %791 = vmatpush.msra.mxu0 %v767
      %792 = vmatpush.msra.mxu0 %v766
      %793 = vmatpush.msra.mxu0 %v765
      %794 = vmatpush.msra.mxu0 %v764
      %795 = vmatmul.f32.gmra.mxu0 %v542
      %v796 = vpop.f32.mrf.mxu0
      %v797 = vadd.f32 0.0, %v796
      %798 = vmatmul.f32.gmra.mxu0 %v545
      %v799 = vpop.f32.mrf.mxu0
      %v800 = vadd.f32 0.0, %v799
      %801 = vmatmul.f32.gmra.mxu0 %v548
      %v802 = vpop.f32.mrf.mxu0
      %v803 = vadd.f32 0.0, %v802
      %804 = vmatmul.f32.gmra.mxu0 %v551
      %v805 = vpop.f32.mrf.mxu0
      %v806 = vadd.f32 0.0, %v805
      %807 = vmatmul.f32.gmra.mxu0 %v554
      %v808 = vpop.f32.mrf.mxu0
      %v809 = vadd.f32 0.0, %v808
      %810 = vmatmul.f32.gmra.mxu0 %v557
      %v811 = vpop.f32.mrf.mxu0
      %v812 = vadd.f32 0.0, %v811
      %813 = vmatmul.f32.gmra.mxu0 %v560
      %v814 = vpop.f32.mrf.mxu0
      %v815 = vadd.f32 0.0, %v814
      %816 = vmatmul.f32.gmra.mxu0 %v563
      %v817 = vpop.f32.mrf.mxu0
      %v818 = vadd.f32 0.0, %v817
      %819 = vmatmul.f32.gmra.mxu0 %v566
      %v820 = vpop.f32.mrf.mxu0
      %v821 = vadd.f32 0.0, %v820
      %822 = vmatmul.f32.gmra.mxu0 %v569
      %v823 = vpop.f32.mrf.mxu0
      %v824 = vadd.f32 0.0, %v823
      %825 = vmatmul.f32.gmra.mxu0 %v572
      %v826 = vpop.f32.mrf.mxu0
      %v827 = vadd.f32 0.0, %v826
      %828 = vmatmul.f32.gmra.mxu0 %v575
      %v829 = vpop.f32.mrf.mxu0
      %v830 = vadd.f32 0.0, %v829
      %831 = vmatmul.f32.gmra.mxu0 %v578
      %v832 = vpop.f32.mrf.mxu0
      %v833 = vadd.f32 0.0, %v832
      %834 = vmatmul.f32.gmra.mxu0 %v581
      %v835 = vpop.f32.mrf.mxu0
      %v836 = vadd.f32 0.0, %v835
      %837 = vmatmul.f32.gmra.mxu0 %v584
      %v838 = vpop.f32.mrf.mxu0
      %v839 = vadd.f32 0.0, %v838
      %840 = vdwg.mxu0
      %v841 = vld [vmem:[%s6] sm:$0xff]
      %v842 = vld [vmem:[%s6 + $0x8] sm:$0xff]
      %v843 = vld [vmem:[%s6 + $0x10] sm:$0xff]
      %v844 = vld [vmem:[%s6 + $0x18] sm:$0xff]
      %v845 = vld [vmem:[#allocation2] sm:$0x1]
      %v847 = vperm.slane %v845, 0
      %v850 = vsel %vm656, %v797, 0
      %v853 = vsel %vm656, %v800, 0
      %v856 = vsel %vm656, %v803, 0
      %v859 = vsel %vm656, %v806, 0
      %v862 = vsel %vm656, %v809, 0
      %v865 = vsel %vm656, %v812, 0
      %v868 = vsel %vm656, %v815, 0
      %v871 = vsel %vm656, %v818, 0
      %v874 = vsel %vm656, %v821, 0
      %v877 = vsel %vm656, %v824, 0
      %v880 = vsel %vm656, %v827, 0
      %v883 = vsel %vm656, %v830, 0
      %v886 = vsel %vm656, %v833, 0
      %v889 = vsel %vm656, %v836, 0
      %v892 = vsel %vm656, %v839, 0
      %894 = vmatpush.msra.mxu0 0.0
      %895 = vmatpush.msra.mxu0 0.0
      %896 = vmatpush.msra.mxu0 0.0
      %897 = vmatpush.msra.mxu0 0.0
      %898 = vmatpush.msra.mxu0 0.0
      %899 = vmatpush.msra.mxu0 0.0
      %900 = vmatpush.msra.mxu0 0.0
      %901 = vmatpush.msra.mxu0 0.0
      %902 = vmatpush.msra.mxu0 0.0
      %903 = vmatpush.msra.mxu0 0.0
      %904 = vmatpush.msra.mxu0 0.0
      %905 = vmatpush.msra.mxu0 0.0
      %906 = vmatpush.msra.mxu0 %v844
      %907 = vmatpush.msra.mxu0 %v843
      %908 = vmatpush.msra.mxu0 %v842
      %909 = vmatpush.msra.mxu0 %v841
      %910 = vmatmul.f32.gmra.mxu0 %v850
      %v911 = vpop.f32.mrf.mxu0
      %v912 = vadd.f32 %v847, %v911
      %913 = vmatmul.f32.gmra.mxu0 %v853
      %v914 = vpop.f32.mrf.mxu0
      %v915 = vadd.f32 %v847, %v914
      %916 = vmatmul.f32.gmra.mxu0 %v856
      %v917 = vpop.f32.mrf.mxu0
      %v918 = vadd.f32 %v847, %v917
      %919 = vmatmul.f32.gmra.mxu0 %v859
      %v920 = vpop.f32.mrf.mxu0
      %v921 = vadd.f32 %v847, %v920
      %922 = vmatmul.f32.gmra.mxu0 %v862
      %v923 = vpop.f32.mrf.mxu0
      %v924 = vadd.f32 %v847, %v923
      %925 = vmatmul.f32.gmra.mxu0 %v865
      %v926 = vpop.f32.mrf.mxu0
      %v927 = vadd.f32 %v847, %v926
      %928 = vmatmul.f32.gmra.mxu0 %v868
      %v929 = vpop.f32.mrf.mxu0
      %v930 = vadd.f32 %v847, %v929
      %931 = vmatmul.f32.gmra.mxu0 %v871
      %v932 = vpop.f32.mrf.mxu0
      %v933 = vadd.f32 %v847, %v932
      %934 = vmatmul.f32.gmra.mxu0 %v874
      %v935 = vpop.f32.mrf.mxu0
      %v936 = vadd.f32 %v847, %v935
      %937 = vmatmul.f32.gmra.mxu0 %v877
      %v938 = vpop.f32.mrf.mxu0
      %v939 = vadd.f32 %v847, %v938
      %940 = vmatmul.f32.gmra.mxu0 %v880
      %v941 = vpop.f32.mrf.mxu0
      %v942 = vadd.f32 %v847, %v941
      %943 = vmatmul.f32.gmra.mxu0 %v883
      %v944 = vpop.f32.mrf.mxu0
      %v945 = vadd.f32 %v847, %v944
      %946 = vmatmul.f32.gmra.mxu0 %v886
      %v947 = vpop.f32.mrf.mxu0
      %v948 = vadd.f32 %v847, %v947
      %949 = vmatmul.f32.gmra.mxu0 %v889
      %v950 = vpop.f32.mrf.mxu0
      %v951 = vadd.f32 %v847, %v950
      %952 = vmatmul.f32.gmra.mxu0 %v892
      %v953 = vpop.f32.mrf.mxu0
      %v954 = vadd.f32 %v847, %v953
      %955 = vdwg.mxu0
      %v956 = vmax.f32 %v912, 0.0
      %v957 = vmax.f32 %v915, 0.0
      %v958 = vmax.f32 %v918, 0.0
      %v959 = vmax.f32 %v921, 0.0
      %v960 = vmax.f32 %v924, 0.0
      %v961 = vmax.f32 %v927, 0.0
      %v962 = vmax.f32 %v930, 0.0
      %v963 = vmax.f32 %v933, 0.0
      %v964 = vmax.f32 %v936, 0.0
      %v965 = vmax.f32 %v939, 0.0
      %v966 = vmax.f32 %v942, 0.0
      %v967 = vmax.f32 %v945, 0.0
      %v968 = vmax.f32 %v948, 0.0
      %v969 = vmax.f32 %v951, 0.0
      %v970 = vmax.f32 %v954, 0.0
      %v971 = vld [vmem:[%s8] sm:$0xff]
      %v972 = vld [vmem:[%s8 + $0x8] sm:$0xff]
      %v973 = vld [vmem:[%s8 + $0x10] sm:$0xff]
      %v974 = vld [vmem:[%s8 + $0x18] sm:$0xff]
      %v975 = vld [vmem:[%s8 + $0x20] sm:$0xff]
      %v976 = vld [vmem:[%s8 + $0x28] sm:$0xff]
      %v977 = vld [vmem:[%s8 + $0x30] sm:$0xff]
      %v978 = vld [vmem:[%s8 + $0x38] sm:$0xff]
      %v979 = vld [vmem:[%s8 + $0x40] sm:$0xff]
      %v980 = vld [vmem:[%s8 + $0x48] sm:$0xff]
      %v981 = vld [vmem:[%s8 + $0x50] sm:$0xff]
      %v982 = vld [vmem:[%s8 + $0x58] sm:$0xff]
      %v983 = vld [vmem:[%s8 + $0x60] sm:$0xff]
      %v984 = vld [vmem:[%s8 + $0x68] sm:$0xff]
      %v985 = vld [vmem:[%s8 + $0x70] sm:$0xff]
      %987 = vset.pattern.permute.xlu0 0
      %988 = vperm.xlu0 %987, %v956
      %v989 = vpop.permute.xlu0 %988
      %992 = vset.pattern.permute.xlu0 0
      %993 = vperm.xlu0 %992, %v957
      %v994 = vpop.permute.xlu0 %993
      %997 = vset.pattern.permute.xlu0 0
      %998 = vperm.xlu0 %997, %v958
      %v999 = vpop.permute.xlu0 %998
      %1002 = vset.pattern.permute.xlu0 0
      %1003 = vperm.xlu0 %1002, %v959
      %v1004 = vpop.permute.xlu0 %1003
      %1007 = vset.pattern.permute.xlu0 0
      %1008 = vperm.xlu0 %1007, %v960
      %v1009 = vpop.permute.xlu0 %1008
      %1012 = vset.pattern.permute.xlu0 0
      %1013 = vperm.xlu0 %1012, %v961
      %v1014 = vpop.permute.xlu0 %1013
      %1017 = vset.pattern.permute.xlu0 0
      %1018 = vperm.xlu0 %1017, %v962
      %v1019 = vpop.permute.xlu0 %1018
      %1022 = vset.pattern.permute.xlu0 0
      %1023 = vperm.xlu0 %1022, %v963
      %v1024 = vpop.permute.xlu0 %1023
      %1027 = vset.pattern.permute.xlu0 0
      %1028 = vperm.xlu0 %1027, %v964
      %v1029 = vpop.permute.xlu0 %1028
      %1032 = vset.pattern.permute.xlu0 0
      %1033 = vperm.xlu0 %1032, %v965
      %v1034 = vpop.permute.xlu0 %1033
      %1037 = vset.pattern.permute.xlu0 0
      %1038 = vperm.xlu0 %1037, %v966
      %v1039 = vpop.permute.xlu0 %1038
      %1042 = vset.pattern.permute.xlu0 0
      %1043 = vperm.xlu0 %1042, %v967
      %v1044 = vpop.permute.xlu0 %1043
      %1047 = vset.pattern.permute.xlu0 0
      %1048 = vperm.xlu0 %1047, %v968
      %v1049 = vpop.permute.xlu0 %1048
      %1052 = vset.pattern.permute.xlu0 0
      %1053 = vperm.xlu0 %1052, %v969
      %v1054 = vpop.permute.xlu0 %1053
      %1057 = vset.pattern.permute.xlu0 0
      %1058 = vperm.xlu0 %1057, %v970
      %v1059 = vpop.permute.xlu0 %1058
      %v1061 = vmul.f32 %v989, %v971
      %v1062 = vmul.f32 %v994, %v972
      %v1063 = vmul.f32 %v999, %v973
      %v1064 = vmul.f32 %v1004, %v974
      %v1065 = vmul.f32 %v1009, %v975
      %v1066 = vmul.f32 %v1014, %v976
      %v1067 = vmul.f32 %v1019, %v977
      %v1068 = vmul.f32 %v1024, %v978
      %v1069 = vmul.f32 %v1029, %v979
      %v1070 = vmul.f32 %v1034, %v980
      %v1071 = vmul.f32 %v1039, %v981
      %v1072 = vmul.f32 %v1044, %v982
      %v1073 = vmul.f32 %v1049, %v983
      %v1074 = vmul.f32 %v1054, %v984
      %v1075 = vmul.f32 %v1059, %v985
      %vm1076 = vcmask 97280
      %v1077 = vsel %vm1076, %v1061, 0.0
      %v1078 = vsel %vm1076, %v1062, 0.0
      %v1079 = vadd.f32 %v1077, %v1078
      %v1080 = vsel %vm1076, %v1063, 0.0
      %v1081 = vadd.f32 %v1079, %v1080
      %v1082 = vsel %vm1076, %v1064, 0.0
      %v1083 = vadd.f32 %v1081, %v1082
      %v1084 = vsel %vm1076, %v1065, 0.0
      %v1085 = vadd.f32 %v1083, %v1084
      %v1086 = vsel %vm1076, %v1066, 0.0
      %v1087 = vadd.f32 %v1085, %v1086
      %v1088 = vsel %vm1076, %v1067, 0.0
      %v1089 = vadd.f32 %v1087, %v1088
      %v1090 = vsel %vm1076, %v1068, 0.0
      %v1091 = vadd.f32 %v1089, %v1090
      %v1092 = vsel %vm1076, %v1069, 0.0
      %v1093 = vadd.f32 %v1091, %v1092
      %v1094 = vsel %vm1076, %v1070, 0.0
      %v1095 = vadd.f32 %v1093, %v1094
      %v1096 = vsel %vm1076, %v1071, 0.0
      %v1097 = vadd.f32 %v1095, %v1096
      %v1098 = vsel %vm1076, %v1072, 0.0
      %v1099 = vadd.f32 %v1097, %v1098
      %v1100 = vsel %vm1076, %v1073, 0.0
      %v1101 = vadd.f32 %v1099, %v1100
      %v1102 = vsel %vm1076, %v1074, 0.0
      %v1103 = vadd.f32 %v1101, %v1102
      %v1104 = vsel %vm1076, %v1075, 0.0
      %v1105 = vadd.f32 %v1103, %v1104
      %v1106 = vrot.slane %v1105, 4
      %v1107 = vadd.f32 %v1105, %v1106
      %v1108 = vrot.slane %v1107, 2
      %v1109 = vadd.f32 %v1107, %v1108
      %v1110 = vrot.slane %v1109, 1
      %v1111 = vadd.f32 %v1109, %v1110
      %v1112 = vld [vmem:[%s9] sm:$0x1]
      %v1113 = vadd.f32 %v1111, %v1112
      %vm1114 = vcmask 90112
      %1115 = vst.msk [vmem:[%s377] sm:$0x1] %vm1114, %v1113
      %p1116 = scmp.lt.s32.totalorder %s23, 1
      %s1117 = scalar_select %p1116, %s23, 1
      %s1118 = scalar_lea.vmem %s10, %s1117
      // Predicated region
      $region61: #{appnp_net_forward.1} parent=59 // pred_check
        %p1119 = pneg %p261
      $region62: #{appnp_net_forward.1} parent=59 // pred_check_branch
        %1121 = sbr.rel (%p1119) target = $region64
      $region63: #{appnp_net_forward.1} parent=59 // pred_region
        _
      $region64: #{appnp_net_forward.1} parent=59 // pred_fallthru
        _
    $region60: #{appnp_net_forward.1} parent=5 // pred_fallthru
      _
    %p1122 = scmp.le.s32.totalorder 2, %s18
    // Predicated region
    $region65: #{appnp_net_forward.1} parent=5 // pred_check
      %p1123 = pneg %p1122
    $region66: #{appnp_net_forward.1} parent=5 // pred_check_branch
      %1125 = sbr.rel (%p1123) target = $region68
    $region67: #{appnp_net_forward.1} parent=5 // pred_region
      %s1126 = ssub.s32 %s18, 2
      // Predicated region
      $region69: #{appnp_net_forward.1} parent=67 // pred_check
        %p1127 = pneg %p267
      $region70: #{appnp_net_forward.1} parent=67 // pred_check_branch
        %1129 = sbr.rel (%p1127) target = $region72
      $region71: #{appnp_net_forward.1} parent=67 // pred_region
        %p1130 = scmp.lt.s32.totalorder %s24, 1
        %s1131 = scalar_select %p1130, %s24, 1
        %s1132 = scalar_lea.vmem %s10, %s1131
      $region72: #{appnp_net_forward.1} parent=67 // pred_fallthru
        _
    $region68: #{appnp_net_forward.1} parent=5 // pred_fallthru
      _
  $region6: #{appnp_net_forward.1} parent=0 // loop_footer
    %s22 = sadd.s32 1, %s18
  $region7: #{appnp_net_forward.1} parent=0 // loop_footer_branch
    %17 = sbr.rel target = $region3
  $region8: #{appnp_net_forward.1} parent=0 // loop_exit
    _

</llo_original>
